<compile_context>
chip_gen: v7x
topology: tpu7x:2x2x1
jax: 0.10.0
libtpu: 0.0.40
codegen_flags: <defaults>
</compile_context>

<pallas_src>
import jax
import jax.numpy as jnp
from jax.experimental import pallas as pl
from jax.experimental.pallas import tpu as pltpu


_SIG_POS = 0.7310585786300049   # sigmoid(+1)
_SIG_NEG = 0.2689414213699951   # sigmoid(-1)
_SIG_ZERO = 0.5                 # sigmoid(0)

_LANE = 128
_SUBLANE = 8


def _stepact_kernel(x_ref, o_ref):
    x = x_ref[...]
    odt = o_ref.dtype
    pos = jnp.asarray(_SIG_POS, odt)
    neg = jnp.asarray(_SIG_NEG, odt)
    mid = jnp.asarray(_SIG_ZERO, odt)
    # sigmoid(1 * sign(x)) == pos for x>0, neg for x<0, 0.5 for x==0.
    base = jnp.where(x > 0, pos, jnp.where(x < 0, neg, mid))
    # Propagate NaN exactly like torch.sigmoid(sign(NaN)). (ne(x,x) is all-False
    # for integer inputs, so this is a no-op there.)
    o_ref[...] = jnp.where(jnp.isnan(x), jnp.asarray(jnp.nan, odt), base)


def _choose_tiles(rows, cols, bytes_per_elem, target_bytes):
    """Pick (tr, tc): tr multiple of 8 (or == rows), tc multiple of 128 (or == cols)."""
    # Lane tile: keep full width unless even an 8-row stripe blows the budget.
    if cols <= _LANE or _SUBLANE * cols * bytes_per_elem <= target_bytes:
        tc = cols
    else:
        tc = max(_LANE, (target_bytes // (_SUBLANE * bytes_per_elem)) // _LANE * _LANE)
    # Row tile: as many 8-row groups as fit the budget.
    if rows <= _SUBLANE:
        tr = rows
    else:
        fit = (target_bytes // max(1, tc * bytes_per_elem)) // _SUBLANE * _SUBLANE
        tr = rows if fit >= rows else max(_SUBLANE, fit)
    return tr, tc


def step_act_2(x: jax.Array, *, target_block_bytes: int = 8 * 1024 * 1024) -> jax.Array:
    """Elementwise sigmoid(sign(x)) computed in a Pallas TPU kernel."""
    orig_shape = x.shape
    in_dtype = x.dtype
    out_dtype = in_dtype if jnp.issubdtype(in_dtype, jnp.floating) else jnp.float32

    if x.size == 0:
        return jnp.zeros(orig_shape, out_dtype)

    in_itemsize = jnp.dtype(in_dtype).itemsize
    out_itemsize = jnp.dtype(out_dtype).itemsize
    per_elem = in_itemsize + out_itemsize  # per-element VMEM footprint (in + out)

    n = x.size
    # Path A: last dim already lane-dense -> collapse leading dims, no relayout.
    lane_dense = x.ndim >= 2 and orig_shape[-1] % _LANE == 0
    pad = 0
    if lane_dense:
        cols = orig_shape[-1]
        rows = n // cols
        x2 = x.reshape(rows, cols)
    else:
        # Path B: flatten and re-chunk into a lane-dense (rows, cols) slab.
        # cols multiple of 128, capped at 2048 and chosen so rows >= 8 when
        # the tensor is big enough (sublane-dense vregs, unmasked stores).
        max_cols = 2048
        c_cand = (n // _SUBLANE) // _LANE * _LANE
        cols = max(_LANE, min(max_cols, c_cand))
        rows = pl.cdiv(n, cols)
        pad = rows * cols - n
        flat = x.reshape(-1)
        if pad:
            flat = jnp.pad(flat, (0, pad))
        x2 = flat.reshape(rows, cols)

    tr, tc = _choose_tiles(rows, cols, per_elem, target_block_bytes)
    grid = (pl.cdiv(rows, tr), pl.cdiv(cols, tc))

    cost = pl.CostEstimate(
        flops=5 * n,                              # 3 compares + 2-3 selects / element
        transcendentals=0,
        bytes_accessed=n * (in_itemsize + out_itemsize),
    )

    out2 = pl.pallas_call(
        _stepact_kernel,
        out_shape=jax.ShapeDtypeStruct((rows, cols), out_dtype),
        grid_spec=pltpu.PrefetchScalarGridSpec(
            num_scalar_prefetch=0,
            grid=grid,
            in_specs=[pl.BlockSpec((tr, tc), lambda i, j: (i, j))],
            out_specs=pl.BlockSpec((tr, tc), lambda i, j: (i, j)),
        ),
        compiler_params=pltpu.CompilerParams(
            # Both axes independent -> v7x shards the grid over its 2 TCs.
            dimension_semantics=("parallel", "parallel"),
            # Raise past v5e's 16 MiB scoped default; headroom under v7x's
            # 64 MiB physical VMEM. Double-buffered in+out block ~= 16 MiB.
            vmem_limit_bytes=48 * 1024 * 1024,
        ),
        cost_estimate=cost,
    )(x2)

    if lane_dense:
        return out2.reshape(orig_shape)
    flat_out = out2.reshape(-1)
    if pad:
        flat_out = flat_out[:n]
    return flat_out.reshape(orig_shape)


if __name__ == "__main__":
    key = jax.random.PRNGKey(0)
    x = jax.random.normal(key, (2, 4, 16, 16), dtype=jnp.float32)

    y = step_act_2(x)
    jax.block_until_ready(y)

    y_ref = jax.nn.sigmoid(1.0 * jnp.sign(x))
    assert y.shape == x.shape
    assert y.dtype == y_ref.dtype
    assert jnp.allclose(y, y_ref, atol=1e-6), "mismatch vs reference (4-D path)"

    # Lane-dense 2-D path (no relayout) + zero / NaN handling.
    x2 = jax.random.normal(jax.random.PRNGKey(1), (64, 256), dtype=jnp.float32)
    x2 = x2.at[0, 0].set(0.0).at[1, 1].set(jnp.nan)
    y2 = step_act_2(x2)
    y2_ref = jax.nn.sigmoid(1.0 * jnp.sign(x2))
    assert jnp.allclose(y2, y2_ref, atol=1e-6, equal_nan=True), "mismatch (2-D path)"

    # Ragged 1-D path (flatten + pad to a lane-dense slab).
    x3 = jnp.linspace(-3.0, 3.0, 1000, dtype=jnp.float32)
    y3 = step_act_2(x3)
    y3_ref = jax.nn.sigmoid(1.0 * jnp.sign(x3))
    assert jnp.allclose(y3, y3_ref, atol=1e-6), "mismatch (1-D path)"

    print("KERNEL_OK")
</pallas_src>

<mosaic_0001>
module attributes {stable_mosaic.version = 11 : i64} {
  func.func @_stepact_kernel(%arg0: i32, %arg1: i32, %arg2: memref<8x256xf32, #tpu.memory_space<vmem>>, %arg3: memref<8x256xf32, #tpu.memory_space<vmem>>) attributes {dimension_semantics = [#tpu.dimension_semantics<parallel>, #tpu.dimension_semantics<parallel>], iteration_bounds = array<i64: 1, 1>, scalar_prefetch = 0 : i64, scratch_operands = 0 : i64, tpu.core_type = #tpu.core_type<tc>, window_params = [{transform_indices = @transform_0, window_bounds = array<i64: 8, 256>}, {transform_indices = @transform_1, window_bounds = array<i64: 8, 256>}]} {
    %c0 = arith.constant 0 : index
    %c0_0 = arith.constant 0 : index
    %0 = vector.load %arg2[%c0, %c0_0] : memref<8x256xf32, #tpu.memory_space<vmem>>, vector<8x256xf32>
    %cst = arith.constant 0.000000e+00 : f32
    %1 = vector.broadcast %cst : f32 to vector<8x256xf32>
    %2 = arith.cmpf ogt, %0, %1 : vector<8x256xf32>
    %cst_1 = arith.constant 0.000000e+00 : f32
    %3 = vector.broadcast %cst_1 : f32 to vector<8x256xf32>
    %4 = arith.cmpf olt, %0, %3 : vector<8x256xf32>
    %cst_2 = arith.constant 0.268941432 : f32
    %cst_3 = arith.constant 5.000000e-01 : f32
    %5 = vector.broadcast %cst_2 : f32 to vector<8x256xf32>
    %6 = vector.broadcast %cst_3 : f32 to vector<8x256xf32>
    %7 = arith.select %4, %5, %6 : vector<8x256xi1>, vector<8x256xf32>
    %cst_4 = arith.constant 0.731058597 : f32
    %8 = vector.broadcast %cst_4 : f32 to vector<8x256xf32>
    %9 = arith.select %2, %8, %7 : vector<8x256xi1>, vector<8x256xf32>
    %10 = arith.cmpf one, %0, %0 : vector<8x256xf32>
    %cst_5 = arith.constant 0x7FC00000 : f32
    %11 = vector.broadcast %cst_5 : f32 to vector<8x256xf32>
    %12 = arith.select %10, %11, %9 : vector<8x256xi1>, vector<8x256xf32>
    %c0_6 = arith.constant 0 : index
    %c0_7 = arith.constant 0 : index
    %13 = vector.load %arg3[%c0_6, %c0_7] : memref<8x256xf32, #tpu.memory_space<vmem>>, vector<8x256xf32>
    tpu.vector_store %arg3[%c0_6, %c0_7], %12 {strides = array<i32>} : memref<8x256xf32, #tpu.memory_space<vmem>>, vector<8x256xf32>,
    return
  }
  func.func @transform_0(%arg0: i32, %arg1: i32) -> (i32, i32) {
    %c0_i32 = arith.constant 0 : i32
    return %arg0, %arg1 : i32, i32
  }
  func.func @transform_1(%arg0: i32, %arg1: i32) -> (i32, i32) {
    %c0_i32 = arith.constant 0 : i32
    return %arg0, %arg1 : i32, i32
  }
}

</mosaic_0001>

<llo_original>
// kernel: tpu_custom_call.1
$region0: #{tpu_custom_call.1}
  #allocation0 [shape = 'u32[]', space=smem, size = 0x4, offset = 0x4, fixed_abs, tag = 'smem constant byte address 0x4 - core index']
  #allocation1 [shape = 'u32[144,128]{1,0:T(1,128)}', space=vmem, size = 0x12000, scoped, tag = 'internal scratch']
  %s0 = inlined_call_operand.hbm [shape: f32[8,256], index: 0, kind: input, shape index: {}]
  %s1 = inlined_call_operand.hbm [shape: f32[8,256], index: 1, kind: output, shape index: {}]
  %s2 = sld [smem:[#allocation0]]
  $region18: #{tpu_custom_call.1} parent=0
    _
  %s4 = ssub.s32 1, %s2
  %s5 = scalar_select 0, %s4, %s2
  $region1: #{tpu_custom_call.1} parent=0
    #allocation2 [shape = 'u8[8192]{0}', space=vmem, size = 0x2000, scoped, tag = 'input window, operand 0, single buffered']
    #allocation3 [shape = 's32[1]{0}', space=sflag, size = 0x4, scoped, tag = 'scoped memory for tpu_custom_call.1']
    #allocation4 [shape = 's32[1]{0}', space=sflag, size = 0x4, scoped, tag = 'scoped memory for tpu_custom_call.1']
    #allocation5 [shape = 'u8[8192]{0}', space=vmem, size = 0x2000, scoped, tag = 'output window, operand 0, single buffered']
    %6 = vsyncpa [#allocation3], 0
    %7 = vsyncpa [#allocation4], 0
    // Predicated region
    $region2: #{tpu_custom_call.1} parent=1 // pred_check
      _
    $region3: #{tpu_custom_call.1} parent=1 // pred_check_branch
      %9 = sbr.rel (0) target = $region5
    $region4: #{tpu_custom_call.1} parent=1 // pred_region
      %s11 = ssub.s32 256, 256
      %12 = vsyncadd [#allocation3], %s11
      %s14 = sshll.u32 [#allocation2], 4
      %s15 = int_to_ptr.vmem [resolvable:$true] %s14
      %17 = dma.hbm_to_vmem [thread:$0]  %s0, 256, %s15, [#allocation3]
    $region5: #{tpu_custom_call.1} parent=1 // pred_fallthru
      _
    // Predicated region
    $region6: #{tpu_custom_call.1} parent=1 // pred_check
      _
    $region7: #{tpu_custom_call.1} parent=1 // pred_check_branch
      %19 = sbr.rel (0) target = $region9
    $region8: #{tpu_custom_call.1} parent=1 // pred_region
      %20 = dma.done [#allocation3], 256
    $region9: #{tpu_custom_call.1} parent=1 // pred_fallthru
      _
    %v21 = vld [vmem:[#allocation2] sm:$0xff]
    %v22 = vld [vmem:[#allocation2 + $0x8] sm:$0xff]
    %vm23 = vcmp.gt.f32.partialorder %v21, 0.0
    %vm24 = vcmp.gt.f32.partialorder %v22, 0.0
    %vm25 = vcmp.lt.f32.partialorder %v21, 0.0
    %vm26 = vcmp.lt.f32.partialorder %v22, 0.0
    %v27 = vsel %vm25, 0.26894143, 0.5
    %v28 = vsel %vm26, 0.26894143, 0.5
    %v29 = vsel %vm23, 0.7310586, %v27
    %v30 = vsel %vm24, 0.7310586, %v28
    %vm31 = vcmp.ne.f32.partialorder %v21, %v21
    %vm32 = vcmp.ne.f32.partialorder %v22, %v22
    %v33 = vsel %vm31, nan, %v29
    %v34 = vsel %vm32, nan, %v30
    %35 = vst [vmem:[#allocation5] sm:$0xff] %v33
    %36 = vst [vmem:[#allocation5 + $0x8] sm:$0xff] %v34
    // Predicated region
    $region10: #{tpu_custom_call.1} parent=1 // pred_check
      _
    $region11: #{tpu_custom_call.1} parent=1 // pred_check_branch
      %38 = sbr.rel (0) target = $region13
    $region12: #{tpu_custom_call.1} parent=1 // pred_region
      %s40 = ssub.s32 256, 256
      %41 = vsyncadd [#allocation4], %s40
      %s43 = sshll.u32 [#allocation5], 4
      %s44 = int_to_ptr.vmem [resolvable:$true] %s43
      %46 = dma.vmem_to_hbm [thread:$0]  %s44, 256, %s1, [#allocation4]
    $region13: #{tpu_custom_call.1} parent=1 // pred_fallthru
      _
    // Predicated region
    $region14: #{tpu_custom_call.1} parent=1 // pred_check
      _
    $region15: #{tpu_custom_call.1} parent=1 // pred_check_branch
      %48 = sbr.rel (0) target = $region17
    $region16: #{tpu_custom_call.1} parent=1 // pred_region
      %49 = dma.done [#allocation4], 256
    $region17: #{tpu_custom_call.1} parent=1 // pred_fallthru
      _
    %50 = vsyncpa [#allocation3], 1
    %51 = vsyncpa [#allocation4], 1

</llo_original>
